<compile_context>
chip_gen: v6e
topology: v6e:2x2x1
jax: 0.10.0
libtpu: 0.0.40
codegen_flags: <defaults>
</compile_context>

<pallas_src>
import functools

import jax
import jax.numpy as jnp
from jax.experimental import pallas as pl
from jax.experimental.pallas import tpu as pltpu


_LANE = 128
_TARGET_BLOCK_ELEMS = 1 << 20      # ~4 MiB of f32 working arrays per block
_ROWS_CAP_TIME_TILED = 4096        # multiple of every packed-sublane count


def _sublane_multiple(itemsize):
    # Packed-sublane multiple for legal/efficient blocks: 8 f32, 16 bf16, 32 int8/fp8.
    return max(8, 32 // max(1, itemsize))


def _round_up(x, m):
    return -(-x // m) * m


def _choose_tiles(R, T, itemsize):
    """Pick (rows_tile, time_tile) targeting ~1M-element input blocks."""
    sub = _sublane_multiple(itemsize)
    if sub * T > _TARGET_BLOCK_ELEMS:
        # Even the thinnest full-T row block overshoots the target: tile time too.
        if R > _ROWS_CAP_TIME_TILED:
            rows = _ROWS_CAP_TIME_TILED
        elif R >= 2 * sub:
            rows = _round_up((R + 1) // 2, sub)       # >= 2 row blocks (megacore)
        else:
            rows = R                                   # full extent (always legal)
        tt = max(_LANE, (_TARGET_BLOCK_ELEMS // max(1, rows)) // _LANE * _LANE)
        tt = min(tt, T)                                # degenerate clamp -> single block
    else:
        tt = T
        rows = max(sub, (_TARGET_BLOCK_ELEMS // max(1, T)) // sub * sub)
        if rows >= R:
            # Whole problem fits in one block: still split rows in two when
            # possible so the "parallel" axis can shard across v7x's 2 TCs.
            rows = _round_up((R + 1) // 2, sub) if R >= 2 * sub else R
    return rows, tt


def _vmem_cap_bytes():
    """Stay well inside physical VMEM (128 MiB v5e/v6e, 64 MiB v7x)."""
    phys = 64 * 1024 * 1024
    try:
        phys = int(getattr(pltpu.get_tpu_info(), "vmem_capacity_bytes", phys))
    except Exception:
        pass
    return max(32 * 1024 * 1024, min(96 * 1024 * 1024, (phys * 3) // 5))


def _vmem_limit_bytes(rows, tt, itemsize, time_tiled):
    blk = rows * tt
    ws = 2 * blk * itemsize          # double-buffered input blocks
    ws += 6 * blk * 4                # f32 cast + shifted copies + diff temporaries
    if time_tiled:
        ws += rows * _LANE * 4       # halo scratch (lane-padded)
    ws += 2 * 1024 * 1024            # output buffers / misc slack
    return int(min(_vmem_cap_bytes(), max(32 * 1024 * 1024, ws)))


def _smoothing_kernel(x_ref, out_ref, *scratch, order, norm, T, TT, n_tb, use_roll):
    """Accumulate per-row sums of |d^order x| or (d^order x)^2 over time blocks."""
    tail_ref = scratch[0] if scratch else None
    j = pl.program_id(1)                               # time-block index (innermost)
    x = x_ref[...].astype(jnp.float32)                 # (rows, TT)

    if use_roll:
        # Shifted copies via XLU lane rotation: roll(x, TT-k)[l] == x[(l+k) % TT].
        if order == 2:
            d = pltpu.roll(x, TT - 2, 1) - 2.0 * pltpu.roll(x, TT - 1, 1) + x
        else:  # order == 3
            d = (pltpu.roll(x, TT - 3, 1) - 3.0 * pltpu.roll(x, TT - 2, 1)
                 + 3.0 * pltpu.roll(x, TT - 1, 1) - x)
        d = jnp.abs(d) if norm == 1 else d * d
        # Valid diff-start lanes: stay inside this block AND inside the array.
        limit = jnp.minimum(TT - order, T - order - j * TT)
        mask = jax.lax.broadcasted_iota(jnp.int32, d.shape, 1) < limit
        block_sum = jnp.sum(jnp.where(mask, d, 0.0), axis=1, keepdims=True)
    else:
        # Tiny / lane-unaligned single-time-block case: direct slices are fine.
        if order == 2:
            d = x[:, 2:] - 2.0 * x[:, 1:-1] + x[:, :-2]
        else:  # order == 3
            d = x[:, 3:] - 3.0 * x[:, 2:-1] + 3.0 * x[:, 1:-2] - x[:, :-3]
        d = jnp.abs(d) if norm == 1 else d * d
        block_sum = jnp.sum(d, axis=1, keepdims=True)

    @pl.when(j == 0)
    def _init():
        out_ref[...] = jnp.zeros_like(out_ref)

    out_ref[...] += block_sum

    if n_tb > 1:
        # Cross-block diffs spanning the j-1 / j boundary (order of them per row),
        # computed from the carried `order`-column tail plus this block's head.
        @pl.when(j > 0)
        def _boundary():
            t = tail_ref[...]                          # (rows, order), prev block tail
            h = x[:, :order]                           # (rows, order), this block head
            pts = ([t[:, k:k + 1] for k in range(order)]
                   + [h[:, k:k + 1] for k in range(order)])
            bsum = jnp.zeros(out_ref.shape, jnp.float32)
            for m in range(order):                     # diff starting at s = j*TT - order + m
                p = pts[m:m + order + 1]
                if order == 2:
                    dm = p[2] - 2.0 * p[1] + p[0]
                else:
                    dm = p[3] - 3.0 * p[2] + 3.0 * p[1] - p[0]
                dm = jnp.abs(dm) if norm == 1 else dm * dm
                dm = jnp.where(j * TT + m < T, dm, 0.0)   # drop diffs running past T
                bsum = bsum + dm
            out_ref[...] += bsum

        # Carry this block's last `order` columns for the next time block.
        tail_ref[...] = x[:, TT - order:]


class SmoothingLoss:
    """JAX/Pallas equivalent of the PyTorch Smoothing_Loss module."""

    def __init__(self, per_param=False, reduction='mean', order=2, norm=2,
                 block_rows=None, block_time=None):
        assert order in (2, 3)
        assert norm in (1, 2)
        assert reduction in ('mean', 'sum')
        self.per_param = per_param
        self.reduction = reduction
        self.order = order
        self.norm = norm
        self.block_rows = block_rows      # optional tuning/testing overrides
        self.block_time = block_time

    def _per_row_sums(self, x2):
        R, T = x2.shape
        itemsize = x2.dtype.itemsize
        rows, tt = _choose_tiles(R, T, itemsize)
        if self.block_rows is not None:
            rows = min(int(self.block_rows), R)
        if self.block_time is not None:
            tt = min(int(self.block_time), T)

        n_i = pl.cdiv(R, rows)
        n_j = pl.cdiv(T, tt)
        if n_j > 1 and tt % _LANE != 0:
            raise ValueError("time tile must be a multiple of 128 when tiling time")
        use_roll = (tt % _LANE == 0)
        time_tiled = n_j > 1

        kernel = functools.partial(
            _smoothing_kernel, order=self.order, norm=self.norm,
            T=T, TT=tt, n_tb=n_j, use_roll=use_roll)
        scratch = [pltpu.VMEM((rows, self.order), jnp.float32)] if time_tiled else []

        out = pl.pallas_call(
            kernel,
            out_shape=jax.ShapeDtypeStruct((R, 1), jnp.float32),
            grid=(n_i, n_j),
            in_specs=[pl.BlockSpec((rows, tt), lambda i, j: (i, j))],
            out_specs=pl.BlockSpec((rows, 1), lambda i, j: (i, 0)),
            scratch_shapes=scratch,
            compiler_params=pltpu.CompilerParams(
                dimension_semantics=("parallel", "arbitrary"),
                vmem_limit_bytes=_vmem_limit_bytes(rows, tt, itemsize, time_tiled),
            ),
        )(x2)
        return out[:, 0]                                  # (R,)

    def __call__(self, x):
        B, C, T = x.shape
        R = B * C
        Td = T - self.order                               # diff length along time

        per_row = self._per_row_sums(x.reshape(R, T))     # per-(b, c) sums over time

        if not self.per_param:
            total = jnp.sum(per_row)
            return total / (R * Td) if self.reduction == 'mean' else total
        # per_param: reduce over time per channel, sqrt, then reduce over channels.
        if self.reduction == 'mean':
            return jnp.mean(jnp.sqrt(per_row / Td))
        return jnp.sum(jnp.sqrt(per_row))


def _reference(x, per_param=False, reduction='mean', order=2, norm=2):
    d = x.astype(jnp.float32)
    for _ in range(order):
        d = jnp.diff(d, axis=2)
    d = jnp.abs(d) if norm == 1 else jnp.square(d)
    if not per_param:
        return jnp.mean(d) if reduction == 'mean' else jnp.sum(d)
    per_chan = jnp.mean(d, axis=2) if reduction == 'mean' else jnp.sum(d, axis=2)
    r = jnp.sqrt(per_chan)
    return jnp.mean(r) if reduction == 'mean' else jnp.sum(r)


if __name__ == "__main__":
    key = jax.random.PRNGKey(0)
    k1, k2, k3 = jax.random.split(key, 3)

    # [batch=2, channels=4, time=16]  - single-block path (slice stencil).
    x_small = jax.random.normal(k1, (2, 4, 16), dtype=jnp.float32)
    # [batch=4, channels=8, time=16]  - two row blocks on the "parallel" axis.
    x_rows = jax.random.normal(k2, (4, 8, 16), dtype=jnp.float32)
    # [batch=2, channels=4, time=300] - forced time tiling (roll stencil + halo carry).
    x_long = jax.random.normal(k3, (2, 4, 300), dtype=jnp.float32)

    def _check(x, msg, block_time=None, **cfg):
        out = jax.block_until_ready(SmoothingLoss(block_time=block_time, **cfg)(x))
        ref = jax.block_until_ready(_reference(x, **cfg))
        assert jnp.allclose(out, ref, rtol=1e-5, atol=1e-6), (msg, out, ref)

    # Default configuration (per_param=False, reduction='mean', order=2, norm=2).
    _check(x_small, "default")
    # per_param / sum path.
    _check(x_small, "per_param-sum", per_param=True, reduction='sum')
    # order=3, norm=1 path.
    _check(x_small, "order3-norm1", order=3, norm=1)
    # Multiple row blocks (parallel axis), f32 and bf16 (16-row sublane packing).
    _check(x_rows, "multi-row-block")
    _check(x_rows.astype(jnp.bfloat16), "multi-row-block-bf16")
    # Time-tiled path (roll stencil, halo carry, partial last time block).
    _check(x_long, "time-tiled-order2", block_time=128)
    _check(x_long, "time-tiled-order3-per-param", block_time=128,
           order=3, per_param=True, reduction='mean')

    print("KERNEL_OK")
</pallas_src>

<mosaic_0001>
module attributes {stable_mosaic.version = 11 : i64} {
  func.func @_smoothing_kernel(%arg0: i32, %arg1: i32, %arg2: memref<8x16xf32, #tpu.memory_space<vmem>>, %arg3: memref<8x1xf32, #tpu.memory_space<vmem>>) attributes {dimension_semantics = [#tpu.dimension_semantics<parallel>, #tpu.dimension_semantics<arbitrary>], iteration_bounds = array<i64: 1, 1>, scalar_prefetch = 0 : i64, scratch_operands = 0 : i64, tpu.core_type = #tpu.core_type<tc>, window_params = [{transform_indices = @transform_0, window_bounds = array<i64: 8, 16>}, {transform_indices = @transform_1, window_bounds = array<i64: 8, 1>}]} {
    %c0 = arith.constant 0 : index
    %c0_0 = arith.constant 0 : index
    %0 = vector.load %arg2[%c0, %c0_0] : memref<8x16xf32, #tpu.memory_space<vmem>>, vector<8x16xf32>
    %1 = vector.extract_strided_slice %0 {offsets = [0, 2], sizes = [8, 14], strides = [1, 1]} : vector<8x16xf32> to vector<8x14xf32>
    %2 = vector.extract_strided_slice %0 {offsets = [0, 1], sizes = [8, 14], strides = [1, 1]} : vector<8x16xf32> to vector<8x14xf32>
    %cst = arith.constant 2.000000e+00 : f32
    %3 = vector.broadcast %cst : f32 to vector<8x14xf32>
    %4 = arith.mulf %3, %2 : vector<8x14xf32>
    %5 = arith.subf %1, %4 : vector<8x14xf32>
    %6 = vector.extract_strided_slice %0 {offsets = [0, 0], sizes = [8, 14], strides = [1, 1]} : vector<8x16xf32> to vector<8x14xf32>
    %7 = arith.addf %5, %6 : vector<8x14xf32>
    %8 = arith.mulf %7, %7 : vector<8x14xf32>
    %cst_1 = arith.constant dense<0.000000e+00> : vector<8xf32>
    %9 = vector.multi_reduction <add>, %8, %cst_1 [1] : vector<8x14xf32> to vector<8xf32>
    %10 = vector.shape_cast %9 : vector<8xf32> to vector<8x1xf32>
    %c0_i32 = arith.constant 0 : i32
    %11 = arith.cmpi eq, %arg1, %c0_i32 : i32
    %12 = arith.extui %11 : i1 to i32
    %c0_i32_2 = arith.constant 0 : i32
    %13 = arith.cmpi ne, %12, %c0_i32_2 : i32
    scf.if %13 {
      %cst_7 = arith.constant 0.000000e+00 : f32
      %17 = vector.broadcast %cst_7 : f32 to vector<8x1xf32>
      %c0_8 = arith.constant 0 : index
      %c0_9 = arith.constant 0 : index
      %18 = vector.load %arg3[%c0_8, %c0_9] : memref<8x1xf32, #tpu.memory_space<vmem>>, vector<8x1xf32>
      tpu.vector_store %arg3[%c0_8, %c0_9], %17 {strides = array<i32>} : memref<8x1xf32, #tpu.memory_space<vmem>>, vector<8x1xf32>,
    } else {
    }
    %c0_3 = arith.constant 0 : index
    %c0_4 = arith.constant 0 : index
    %14 = vector.load %arg3[%c0_3, %c0_4] : memref<8x1xf32, #tpu.memory_space<vmem>>, vector<8x1xf32>
    %15 = arith.addf %14, %10 : vector<8x1xf32>
    %c0_5 = arith.constant 0 : index
    %c0_6 = arith.constant 0 : index
    %16 = vector.load %arg3[%c0_5, %c0_6] : memref<8x1xf32, #tpu.memory_space<vmem>>, vector<8x1xf32>
    tpu.vector_store %arg3[%c0_5, %c0_6], %15 {strides = array<i32>} : memref<8x1xf32, #tpu.memory_space<vmem>>, vector<8x1xf32>,
    return
  }
  func.func @transform_0(%arg0: i32, %arg1: i32) -> (i32, i32) {
    %c0_i32 = arith.constant 0 : i32
    return %arg0, %arg1 : i32, i32
  }
  func.func @transform_1(%arg0: i32, %arg1: i32) -> (i32, i32) {
    %c0_i32 = arith.constant 0 : i32
    %c0_i32_0 = arith.constant 0 : i32
    return %arg0, %c0_i32 : i32, i32
  }
}

</mosaic_0001>

<llo_original>
// kernel: tpu_custom_call.1
$region0: #{tpu_custom_call.1}
  #allocation0 [shape = 'u32[]', space=smem, size = 0x4, offset = 0x4, fixed_abs, tag = 'smem constant byte address 0x4 - core index']
  #allocation1 [shape = 'u32[144,128]{1,0:T(1,128)}', space=vmem, size = 0x12000, scoped, tag = 'internal scratch']
  %s0 = inlined_call_operand.hbm [shape: f32[8,16], index: 0, kind: input, shape index: {}]
  %s1 = inlined_call_operand.vmem [shape: f32[8,1], index: 1, kind: output, shape index: {}]
  %s2 = sld [smem:[#allocation0]]
  $region22: #{tpu_custom_call.1} parent=0
    _
  %s4 = ssub.s32 1, %s2
  %s5 = scalar_select 0, %s4, %s2
  $region1: #{tpu_custom_call.1} parent=0
    #allocation2 [shape = 'u8[4096]{0}', space=vmem, size = 0x1000, scoped, tag = 'input window, operand 0, single buffered']
    #allocation3 [shape = 's32[1]{0}', space=sflag, size = 0x4, scoped, tag = 'scoped memory for tpu_custom_call.1']
    %6 = vsyncpa [#allocation3], 0
    // Predicated region
    $region2: #{tpu_custom_call.1} parent=1 // pred_check
      _
    $region3: #{tpu_custom_call.1} parent=1 // pred_check_branch
      %8 = sbr.rel (0) target = $region5
    $region4: #{tpu_custom_call.1} parent=1 // pred_region
      %s10 = ssub.s32 128, 128
      %11 = vsyncadd [#allocation3], %s10
      %s13 = sshll.u32 [#allocation2], 4
      %s14 = int_to_ptr.vmem [resolvable:$true] %s13
      %16 = dma.hbm_to_vmem [thread:$0]  %s0, 128, %s14, [#allocation3]
    $region5: #{tpu_custom_call.1} parent=1 // pred_fallthru
      _
    // Predicated region
    $region6: #{tpu_custom_call.1} parent=1 // pred_check
      _
    $region7: #{tpu_custom_call.1} parent=1 // pred_check_branch
      %18 = sbr.rel (0) target = $region9
    $region8: #{tpu_custom_call.1} parent=1 // pred_region
      %19 = dma.done [#allocation3], 128
    $region9: #{tpu_custom_call.1} parent=1 // pred_fallthru
      _
    %v20 = vld [vmem:[#allocation2] sm:$0xff]
    %v21 = vmul.f32 %v20, 2.0
    %23 = vrot.lane.b32.xlu0 %v21, 1
    %v24 = vpop.permute.xlu0 %23
    %v26 = vsub.f32 %v20, %v24
    %28 = vrot.lane.b32.xlu0 %v20, 2
    %v29 = vpop.permute.xlu0 %28
    %v31 = vadd.f32 %v26, %v29
    %v32 = vmul.f32 %v31, %v31
    %34 = vrot.lane.b32.xlu0 %v32, 126
    %v35 = vpop.permute.xlu0 %34
    %vm37 = vcmask 113664
    %v38 = vsel %vm37, %v35, 0.0
    %39 = vadd.xlane.f32.xlu0 %v38
    %v40 = vpop.xlane.xlu0 %39
    %p41 = scmp.eq.s32.totalorder 0, 0
    // Predicated region
    $region10: #{tpu_custom_call.1} parent=1 // pred_check
      %p42 = pneg %p41
    $region11: #{tpu_custom_call.1} parent=1 // pred_check_branch
      %44 = sbr.rel (%p42) target = $region13
    $region12: #{tpu_custom_call.1} parent=1 // pred_region
      %vm45 = vcmask 7168
      %46 = vst.msk [vmem:[%s1] sm:$0xff] %vm45, 0.0
    $region13: #{tpu_custom_call.1} parent=1 // pred_fallthru
      _
    %v47 = vld [vmem:[%s1] sm:$0xff]
    %v48 = vadd.f32 %v47, %v40
    %vm49 = vcmask 7168
    %50 = vst.msk [vmem:[%s1] sm:$0xff] %vm49, %v48
    // Predicated region
    $region14: #{tpu_custom_call.1} parent=1 // pred_check
      _
    $region15: #{tpu_custom_call.1} parent=1 // pred_check_branch
      %52 = sbr.rel (0) target = $region17
    $region16: #{tpu_custom_call.1} parent=1 // pred_region
      _
    $region17: #{tpu_custom_call.1} parent=1 // pred_fallthru
      _
    // Predicated region
    $region18: #{tpu_custom_call.1} parent=1 // pred_check
      _
    $region19: #{tpu_custom_call.1} parent=1 // pred_check_branch
      %54 = sbr.rel (0) target = $region21
    $region20: #{tpu_custom_call.1} parent=1 // pred_region
      _
    $region21: #{tpu_custom_call.1} parent=1 // pred_fallthru
      _
    %55 = vsyncpa [#allocation3], 1

</llo_original>
